<compile_context>
chip_gen: v6e
topology: v6e:2x2x1
jax: 0.10.0
libtpu: 0.0.40
codegen_flags: <defaults>
</compile_context>

<pallas_src>
import jax
import jax.numpy as jnp
import numpy as np
from jax.experimental import pallas as pl
from jax.experimental.pallas import tpu as pltpu

N_NODES = 16        # total nodes in the (small) batched graph
N_FEAT = 22         # ENZYMES contfeat: 18 cont + 3 labels + 1 degree
HIDDEN = 200        # nn = 200 in the module
HIDDEN_PAD = 256    # lane-dense padding of the hidden dim
N_GRAPHS = 2        # graphs in the batch
N_CLASSES = 6
NEG_BIG = 1e30      # finite "minus infinity" for the masked max


# ----------------------------------------------------------------------------
# Fused kernel: MLP (2x Linear+ReLU) -> mean/max pooling -> fc2 -> log_softmax
# ----------------------------------------------------------------------------
def mlpnet_kernel(x_ref, ms_ref, bias_ref,
                  w1_ref, b1_ref, w2_ref, b2_ref, wfc_ref, bfc_ref,
                  out_ref):
    x = x_ref[...]                                                   # [N, F]

    # Layer 1: Linear + ReLU (padded hidden cols stay exactly 0).
    h = jnp.maximum(
        jnp.dot(x, w1_ref[...], preferred_element_type=jnp.float32) + b1_ref[...],
        0.0)                                                         # [N, Hp]

    # Layer 2: Linear + ReLU.  w2 is stored bf16 (half the DMA); widen to f32
    # so accumulation and all elementwise math stay in f32 (v5e has no bf16 VPU).
    w2 = w2_ref[...].astype(jnp.float32)
    h = jnp.maximum(
        jnp.dot(h, w2, preferred_element_type=jnp.float32) + b2_ref[...],
        0.0)                                                         # [N, Hp]

    # Mean pool: membership already scaled by 1/count -> a single matmul.
    mean_pool = jnp.dot(ms_ref[...], h, preferred_element_type=jnp.float32)  # [G, Hp]

    # Max pool: precomputed additive bias (0 for members, -1e30 otherwise);
    # unrolled over the G=2 graphs (general membership kept on purpose; a
    # reshape-based segment reduce would require contiguous equal-size graphs).
    bias = bias_ref[...]                                             # [N, G]
    rows = []
    for g in range(N_GRAPHS):
        rows.append(jnp.max(h + bias[:, g:g + 1], axis=0, keepdims=True))  # [1, Hp]
    max_pool = jnp.concatenate(rows, axis=0)                         # [G, Hp]

    # Classifier on cat([mean | max]) + numerically stable log_softmax.
    z = jnp.concatenate([mean_pool, max_pool], axis=1)               # [G, 2*Hp]
    logits = (jnp.dot(z, wfc_ref[...], preferred_element_type=jnp.float32)
              + bfc_ref[...])                                        # [G, C]
    mx = jnp.max(logits, axis=1, keepdims=True)
    sh = logits - mx
    out_ref[...] = sh - jnp.log(jnp.sum(jnp.exp(sh), axis=1, keepdims=True))


# ----------------------------------------------------------------------------
# One-time prep (NOT in the hot path): pad params, build pooling operands
# ----------------------------------------------------------------------------
def pad_params(params):
    """Zero-pad hidden dim 200 -> 256 and quantize w2 to bf16.  Call once."""
    hp = HIDDEN_PAD - HIDDEN
    w1p = jnp.pad(params["w1"], ((0, 0), (0, hp)))
    b1p = jnp.pad(params["b1"], ((0, 0), (0, hp)))
    w2p = jnp.pad(params["w2"], ((0, hp), (0, hp))).astype(jnp.bfloat16)
    b2p = jnp.pad(params["b2"], ((0, 0), (0, hp)))
    # fc2 acts on cat([mean, max]); pad each half's rows to HIDDEN_PAD so the
    # padded (always-zero) pooled columns hit zero classifier rows -> exact.
    w_mean = jnp.pad(params["w_fc"][:HIDDEN, :], ((0, hp), (0, 0)))
    w_max = jnp.pad(params["w_fc"][HIDDEN:, :], ((0, hp), (0, 0)))
    wfcp = jnp.concatenate([w_mean, w_max], axis=0)          # [2*HIDDEN_PAD, C]
    return {
        "w1": w1p, "b1": b1p, "w2": w2p, "b2": b2p,
        "w_fc": wfcp, "b_fc": params["b_fc"],
    }


def prepare_graph(batch):
    """Build pooling operands once per batch structure.

    Returns:
      member_scaled: [G, N] f32, 1/count_g for members of graph g else 0.
      max_bias:      [N, G] f32, 0 for members else -1e30 (additive max mask).
    Precondition: every graph is non-empty.
    """
    member = (batch[None, :] == jnp.arange(N_GRAPHS)[:, None]).astype(jnp.float32)
    counts = member.sum(axis=1, keepdims=True)
    member_scaled = member / counts
    max_bias = (member.T - 1.0) * NEG_BIG
    return member_scaled, max_bias


# ----------------------------------------------------------------------------
# Hot path: single grid-less pallas_call, whole arrays resident in VMEM
# ----------------------------------------------------------------------------
@jax.jit
def mlpnet_forward(x, member_scaled, max_bias, padded):
    args = (x, member_scaled, max_bias,
            padded["w1"], padded["b1"], padded["w2"], padded["b2"],
            padded["w_fc"], padded["b_fc"])
    vmem = pltpu.MemorySpace.VMEM
    return pl.pallas_call(
        mlpnet_kernel,
        out_shape=jax.ShapeDtypeStruct((N_GRAPHS, N_CLASSES), jnp.float32),
        in_specs=[pl.BlockSpec(memory_space=vmem) for _ in args],
        out_specs=pl.BlockSpec(memory_space=vmem),
    )(*args)


# ----------------------------------------------------------------------------
# Pure-JAX reference (unpadded) for correctness checking
# ----------------------------------------------------------------------------
def mlpnet_reference(x, batch, params, quantize_w2=False):
    w2 = params["w2"]
    if quantize_w2:  # same bf16 weight rounding the kernel applies
        w2 = w2.astype(jnp.bfloat16).astype(jnp.float32)
    h = jnp.maximum(x @ params["w1"] + params["b1"], 0.0)
    h = jnp.maximum(h @ w2 + params["b2"], 0.0)
    member = (batch[None, :] == jnp.arange(N_GRAPHS)[:, None]).astype(jnp.float32)
    counts = member.sum(axis=1, keepdims=True)
    mean_pool = (member @ h) / counts
    masked = jnp.where(member[:, :, None] > 0.5, h[None, :, :], -jnp.inf)
    max_pool = jnp.max(masked, axis=1)
    z = jnp.concatenate([mean_pool, max_pool], axis=1)
    return jax.nn.log_softmax(z @ params["w_fc"] + params["b_fc"], axis=1)


# ----------------------------------------------------------------------------
# Deterministic parameter / input construction
# ----------------------------------------------------------------------------
def make_params(key):
    ks = jax.random.split(key, 6)
    f32 = jnp.float32
    w1 = jax.random.normal(ks[0], (N_FEAT, HIDDEN), f32) * 0.1
    b1 = jax.random.normal(ks[1], (1, HIDDEN), f32) * 0.01
    w2 = jax.random.normal(ks[2], (HIDDEN, HIDDEN), f32) * 0.1
    b2 = jax.random.normal(ks[3], (1, HIDDEN), f32) * 0.01
    w_fc = jax.random.normal(ks[4], (2 * HIDDEN, N_CLASSES), f32) * 0.1
    b_fc = jax.random.normal(ks[5], (1, N_CLASSES), f32) * 0.01
    return {"w1": w1, "b1": b1, "w2": w2, "b2": b2, "w_fc": w_fc, "b_fc": b_fc}


if __name__ == "__main__":
    key = jax.random.PRNGKey(0)
    k_x, k_p = jax.random.split(key)

    # --- one-time init (outside the hot path) ---
    params = make_params(k_p)
    padded = jax.tree_util.tree_map(jax.block_until_ready, pad_params(params))

    # two graphs of 8 nodes each (only the batch membership matters for MlpNet)
    batch = jnp.asarray(np.array([0] * 8 + [1] * 8, dtype=np.int32))
    member_scaled, max_bias = prepare_graph(batch)
    x = jax.random.normal(k_x, (N_NODES, N_FEAT), jnp.float32)

    # --- hot path: one fused kernel call ---
    out = jax.block_until_ready(mlpnet_forward(x, member_scaled, max_bias, padded))
    assert out.shape == (N_GRAPHS, N_CLASSES), out.shape

    # Tight check against a reference using the same bf16-rounded w2
    ref_q = mlpnet_reference(x, batch, params, quantize_w2=True)
    np.testing.assert_allclose(np.asarray(out), np.asarray(ref_q),
                               rtol=1e-4, atol=1e-4)
    # Loose sanity check against the exact f32 module math (gap bounded by
    # the deliberate bf16 rounding of w2).
    ref = mlpnet_reference(x, batch, params, quantize_w2=False)
    np.testing.assert_allclose(np.asarray(out), np.asarray(ref),
                               rtol=1e-1, atol=1e-1)

    print("KERNEL_OK")
</pallas_src>

<mosaic_0001>
module attributes {stable_mosaic.version = 11 : i64} {
  func.func @mlpnet_kernel(%arg0: memref<16x22xf32, #tpu.memory_space<vmem>>, %arg1: memref<2x16xf32, #tpu.memory_space<vmem>>, %arg2: memref<16x2xf32, #tpu.memory_space<vmem>>, %arg3: memref<22x256xf32, #tpu.memory_space<vmem>>, %arg4: memref<1x256xf32, #tpu.memory_space<vmem>>, %arg5: memref<256x256xbf16, #tpu.memory_space<vmem>>, %arg6: memref<1x256xf32, #tpu.memory_space<vmem>>, %arg7: memref<512x6xf32, #tpu.memory_space<vmem>>, %arg8: memref<1x6xf32, #tpu.memory_space<vmem>>, %arg9: memref<2x6xf32, #tpu.memory_space<vmem>>) attributes {dimension_semantics = [], scalar_prefetch = 0 : i64, scratch_operands = 0 : i64, tpu.core_type = #tpu.core_type<tc>} {
    %c0 = arith.constant 0 : index
    %c0_0 = arith.constant 0 : index
    %0 = vector.load %arg0[%c0, %c0_0] : memref<16x22xf32, #tpu.memory_space<vmem>>, vector<16x22xf32>
    %c0_1 = arith.constant 0 : index
    %c0_2 = arith.constant 0 : index
    %1 = vector.load %arg3[%c0_1, %c0_2] : memref<22x256xf32, #tpu.memory_space<vmem>>, vector<22x256xf32>
    %cst = arith.constant dense<0.000000e+00> : vector<16x256xf32>
    %2 = tpu.matmul %0, %1, %cst {dimension_numbers = #tpu.dot_dimension_numbers<[1], [0], [0], [1], [0, 0, 1, 1], [], []>} : vector<16x22xf32>, vector<22x256xf32>, vector<16x256xf32> -> vector<16x256xf32>
    %c0_3 = arith.constant 0 : index
    %c0_4 = arith.constant 0 : index
    %3 = vector.load %arg4[%c0_3, %c0_4] : memref<1x256xf32, #tpu.memory_space<vmem>>, vector<1x256xf32>
    %4 = vector.broadcast %3 : vector<1x256xf32> to vector<16x256xf32>
    %5 = arith.addf %2, %4 : vector<16x256xf32>
    %cst_5 = arith.constant 0.000000e+00 : f32
    %6 = vector.broadcast %cst_5 : f32 to vector<16x256xf32>
    %7 = arith.maximumf %5, %6 : vector<16x256xf32>
    %c0_6 = arith.constant 0 : index
    %c0_7 = arith.constant 0 : index
    %8 = vector.load %arg5[%c0_6, %c0_7] : memref<256x256xbf16, #tpu.memory_space<vmem>>, vector<256x256xbf16>
    %9 = arith.extf %8 : vector<256x256xbf16> to vector<256x256xf32>
    %cst_8 = arith.constant dense<0.000000e+00> : vector<16x256xf32>
    %10 = tpu.matmul %7, %9, %cst_8 {dimension_numbers = #tpu.dot_dimension_numbers<[1], [0], [0], [1], [0, 0, 1, 1], [], []>} : vector<16x256xf32>, vector<256x256xf32>, vector<16x256xf32> -> vector<16x256xf32>
    %c0_9 = arith.constant 0 : index
    %c0_10 = arith.constant 0 : index
    %11 = vector.load %arg6[%c0_9, %c0_10] : memref<1x256xf32, #tpu.memory_space<vmem>>, vector<1x256xf32>
    %12 = vector.broadcast %11 : vector<1x256xf32> to vector<16x256xf32>
    %13 = arith.addf %10, %12 : vector<16x256xf32>
    %cst_11 = arith.constant 0.000000e+00 : f32
    %14 = vector.broadcast %cst_11 : f32 to vector<16x256xf32>
    %15 = arith.maximumf %13, %14 : vector<16x256xf32>
    %c0_12 = arith.constant 0 : index
    %c0_13 = arith.constant 0 : index
    %16 = vector.load %arg1[%c0_12, %c0_13] : memref<2x16xf32, #tpu.memory_space<vmem>>, vector<2x16xf32>
    %cst_14 = arith.constant dense<0.000000e+00> : vector<2x256xf32>
    %17 = tpu.matmul %16, %15, %cst_14 {dimension_numbers = #tpu.dot_dimension_numbers<[1], [0], [0], [1], [0, 0, 1, 1], [], []>} : vector<2x16xf32>, vector<16x256xf32>, vector<2x256xf32> -> vector<2x256xf32>
    %c0_15 = arith.constant 0 : index
    %c0_16 = arith.constant 0 : index
    %18 = vector.load %arg2[%c0_15, %c0_16] : memref<16x2xf32, #tpu.memory_space<vmem>>, vector<16x2xf32>
    %19 = vector.extract_strided_slice %18 {offsets = [0, 0], sizes = [16, 1], strides = [1, 1]} : vector<16x2xf32> to vector<16x1xf32>
    %20 = vector.broadcast %19 : vector<16x1xf32> to vector<16x256xf32>
    %21 = arith.addf %15, %20 : vector<16x256xf32>
    %cst_17 = arith.constant dense<0xFF800000> : vector<256xf32>
    %22 = vector.multi_reduction <maximumf>, %21, %cst_17 [0] : vector<16x256xf32> to vector<256xf32>
    %23 = vector.shape_cast %22 : vector<256xf32> to vector<1x256xf32>
    %24 = vector.extract_strided_slice %18 {offsets = [0, 1], sizes = [16, 1], strides = [1, 1]} : vector<16x2xf32> to vector<16x1xf32>
    %25 = vector.broadcast %24 : vector<16x1xf32> to vector<16x256xf32>
    %26 = arith.addf %15, %25 : vector<16x256xf32>
    %cst_18 = arith.constant dense<0xFF800000> : vector<256xf32>
    %27 = vector.multi_reduction <maximumf>, %26, %cst_18 [0] : vector<16x256xf32> to vector<256xf32>
    %28 = vector.shape_cast %27 : vector<256xf32> to vector<1x256xf32>
    %29 = tpu.concatenate %23, %28 in 0 : vector<1x256xf32>, vector<1x256xf32> -> vector<2x256xf32>
    %30 = tpu.concatenate %17, %29 in 1 : vector<2x256xf32>, vector<2x256xf32> -> vector<2x512xf32>
    %c0_19 = arith.constant 0 : index
    %c0_20 = arith.constant 0 : index
    %31 = vector.load %arg7[%c0_19, %c0_20] : memref<512x6xf32, #tpu.memory_space<vmem>>, vector<512x6xf32>
    %cst_21 = arith.constant dense<0.000000e+00> : vector<2x6xf32>
    %32 = tpu.matmul %30, %31, %cst_21 {dimension_numbers = #tpu.dot_dimension_numbers<[1], [0], [0], [1], [0, 0, 1, 1], [], []>} : vector<2x512xf32>, vector<512x6xf32>, vector<2x6xf32> -> vector<2x6xf32>
    %c0_22 = arith.constant 0 : index
    %c0_23 = arith.constant 0 : index
    %33 = vector.load %arg8[%c0_22, %c0_23] : memref<1x6xf32, #tpu.memory_space<vmem>>, vector<1x6xf32>
    %34 = vector.broadcast %33 : vector<1x6xf32> to vector<2x6xf32>
    %35 = arith.addf %32, %34 : vector<2x6xf32>
    %cst_24 = arith.constant dense<0xFF800000> : vector<2xf32>
    %36 = vector.multi_reduction <maximumf>, %35, %cst_24 [1] : vector<2x6xf32> to vector<2xf32>
    %37 = vector.shape_cast %36 : vector<2xf32> to vector<2x1xf32>
    %38 = vector.broadcast %37 : vector<2x1xf32> to vector<2x6xf32>
    %39 = arith.subf %35, %38 : vector<2x6xf32>
    %40 = math.exp %39 : vector<2x6xf32>
    %cst_25 = arith.constant dense<0.000000e+00> : vector<2xf32>
    %41 = vector.multi_reduction <add>, %40, %cst_25 [1] : vector<2x6xf32> to vector<2xf32>
    %42 = vector.shape_cast %41 : vector<2xf32> to vector<2x1xf32>
    %43 = math.log %42 : vector<2x1xf32>
    %44 = vector.broadcast %43 : vector<2x1xf32> to vector<2x6xf32>
    %45 = arith.subf %39, %44 : vector<2x6xf32>
    %c0_26 = arith.constant 0 : index
    %c0_27 = arith.constant 0 : index
    %46 = vector.load %arg9[%c0_26, %c0_27] : memref<2x6xf32, #tpu.memory_space<vmem>>, vector<2x6xf32>
    tpu.vector_store %arg9[%c0_26, %c0_27], %45 {strides = array<i32>} : memref<2x6xf32, #tpu.memory_space<vmem>>, vector<2x6xf32>,
    return
  }
}

</mosaic_0001>

<llo_original>
// kernel: mlpnet_forward.1
$region0: #{mlpnet_forward.1}
  #allocation0 [shape = 'u32[]', space=smem, size = 0x4, offset = 0x4, fixed_abs, tag = 'smem constant byte address 0x4 - core index']
  #allocation1 [shape = 'u32[144,128]{1,0:T(1,128)}', space=vmem, size = 0x12000, scoped, tag = 'internal scratch']
  %s0 = inlined_call_operand.vmem [shape: f32[16,22], index: 0, kind: input, shape index: {}]
  %s1 = inlined_call_operand.vmem [shape: f32[2,16], index: 1, kind: input, shape index: {}]
  %s2 = inlined_call_operand.vmem [shape: f32[16,2], index: 2, kind: input, shape index: {}]
  %s3 = inlined_call_operand.vmem [shape: f32[22,256], index: 3, kind: input, shape index: {}]
  %s4 = inlined_call_operand.vmem [shape: f32[1,256], index: 4, kind: input, shape index: {}]
  %s5 = inlined_call_operand.vmem [shape: bf16[256,256], index: 5, kind: input, shape index: {}]
  %s6 = inlined_call_operand.vmem [shape: f32[1,256], index: 6, kind: input, shape index: {}]
  %s7 = inlined_call_operand.vmem [shape: f32[512,6], index: 7, kind: input, shape index: {}]
  %s8 = inlined_call_operand.vmem [shape: f32[1,6], index: 8, kind: input, shape index: {}]
  %s9 = inlined_call_operand.hbm [shape: f32[2,6], index: 9, kind: output, shape index: {}]
  %s10 = sld [smem:[#allocation0]]
  $region46: #{mlpnet_forward.1} parent=0
    _
  %s12 = ssub.s32 1, %s10
  %s13 = scalar_select 0, %s12, %s10
  $region1: #{mlpnet_forward.1} parent=0
    #allocation2 [shape = 'u8[1024]{0}', space=vmem, size = 0x400, scoped, tag = 'output window, operand 0, single buffered']
    #allocation3 [shape = 's32[1]{0}', space=sflag, size = 0x4, scoped, tag = 'scoped memory for mlpnet_forward.1']
    %14 = vsyncpa [#allocation3], 0
    // Predicated region
    $region2: #{mlpnet_forward.1} parent=1 // pred_check
      _
    $region3: #{mlpnet_forward.1} parent=1 // pred_check_branch
      %16 = sbr.rel (0) target = $region5
    $region4: #{mlpnet_forward.1} parent=1 // pred_region
      _
    $region5: #{mlpnet_forward.1} parent=1 // pred_fallthru
      _
    // Predicated region
    $region6: #{mlpnet_forward.1} parent=1 // pred_check
      _
    $region7: #{mlpnet_forward.1} parent=1 // pred_check_branch
      %18 = sbr.rel (0) target = $region9
    $region8: #{mlpnet_forward.1} parent=1 // pred_region
      _
    $region9: #{mlpnet_forward.1} parent=1 // pred_fallthru
      _
    // Predicated region
    $region10: #{mlpnet_forward.1} parent=1 // pred_check
      _
    $region11: #{mlpnet_forward.1} parent=1 // pred_check_branch
      %20 = sbr.rel (0) target = $region13
    $region12: #{mlpnet_forward.1} parent=1 // pred_region
      _
    $region13: #{mlpnet_forward.1} parent=1 // pred_fallthru
      _
    // Predicated region
    $region14: #{mlpnet_forward.1} parent=1 // pred_check
      _
    $region15: #{mlpnet_forward.1} parent=1 // pred_check_branch
      %22 = sbr.rel (0) target = $region17
    $region16: #{mlpnet_forward.1} parent=1 // pred_region
      _
    $region17: #{mlpnet_forward.1} parent=1 // pred_fallthru
      _
    // Predicated region
    $region18: #{mlpnet_forward.1} parent=1 // pred_check
      _
    $region19: #{mlpnet_forward.1} parent=1 // pred_check_branch
      %24 = sbr.rel (0) target = $region21
    $region20: #{mlpnet_forward.1} parent=1 // pred_region
      _
    $region21: #{mlpnet_forward.1} parent=1 // pred_fallthru
      _
    // Predicated region
    $region22: #{mlpnet_forward.1} parent=1 // pred_check
      _
    $region23: #{mlpnet_forward.1} parent=1 // pred_check_branch
      %26 = sbr.rel (0) target = $region25
    $region24: #{mlpnet_forward.1} parent=1 // pred_region
      _
    $region25: #{mlpnet_forward.1} parent=1 // pred_fallthru
      _
    // Predicated region
    $region26: #{mlpnet_forward.1} parent=1 // pred_check
      _
    $region27: #{mlpnet_forward.1} parent=1 // pred_check_branch
      %28 = sbr.rel (0) target = $region29
    $region28: #{mlpnet_forward.1} parent=1 // pred_region
      _
    $region29: #{mlpnet_forward.1} parent=1 // pred_fallthru
      _
    // Predicated region
    $region30: #{mlpnet_forward.1} parent=1 // pred_check
      _
    $region31: #{mlpnet_forward.1} parent=1 // pred_check_branch
      %30 = sbr.rel (0) target = $region33
    $region32: #{mlpnet_forward.1} parent=1 // pred_region
      _
    $region33: #{mlpnet_forward.1} parent=1 // pred_fallthru
      _
    // Predicated region
    $region34: #{mlpnet_forward.1} parent=1 // pred_check
      _
    $region35: #{mlpnet_forward.1} parent=1 // pred_check_branch
      %32 = sbr.rel (0) target = $region37
    $region36: #{mlpnet_forward.1} parent=1 // pred_region
      _
    $region37: #{mlpnet_forward.1} parent=1 // pred_fallthru
      _
    %v33 = vld [vmem:[%s0] sm:$0xff]
    %v34 = vld [vmem:[%s0 + $0x8] sm:$0xff]
    %v35 = vld [vmem:[%s3] sm:$0xff]
    %v36 = vld [vmem:[%s3 + $0x8] sm:$0xff]
    %v37 = vld [vmem:[%s3 + $0x10] sm:$0xff]
    %v38 = vld [vmem:[%s3 + $0x18] sm:$0xff]
    %v39 = vld [vmem:[%s3 + $0x20] sm:$0x3f]
    %v40 = vld [vmem:[%s3 + $0x28] sm:$0x3f]
    %v41 = vld [vmem:[%s4] sm:$0x3]
    %v43 = vlaneseq
    %v44 = vshrl.u32 %v43, 7
    %v45 = vsub.s32 0, %v44
    %v46 = vrot.slane %v41, %v45
    %v47 = vlaneseq
    %v48 = vshrl.u32 %v47, 7
    %v49 = vsub.s32 1, %v48
    %v50 = vrot.slane %v41, %v49
    %vm53 = vcmask 179200
    %v55 = vsel %vm53, %v33, 0
    %v58 = vsel %vm53, %v34, 0
    %vm60 = vcmask 1045504
    %v62 = vsel %vm60, %v39, 0
    %v65 = vsel %vm60, %v40, 0
    %67 = vmatprep.subr.mxu0 0.0
    %68 = vmatpush1.msra.mxu0 0.0
    %69 = vmatprep.subr.mxu0 0.0
    %70 = vmatpush1.msra.mxu0 0.0
    %71 = vmatprep.subr.mxu0 0.0
    %72 = vmatpush1.msra.mxu0 0.0
    %73 = vmatprep.subr.mxu0 0.0
    %74 = vmatpush1.msra.mxu0 0.0
    %75 = vmatprep.subr.mxu0 0.0
    %76 = vmatpush1.msra.mxu0 0.0
    %77 = vmatprep.subr.mxu0 0.0
    %78 = vmatpush1.msra.mxu0 0.0
    %79 = vmatprep.subr.mxu0 0.0
    %80 = vmatpush1.msra.mxu0 0.0
    %81 = vmatprep.subr.mxu0 0.0
    %82 = vmatpush1.msra.mxu0 0.0
    %83 = vmatprep.subr.mxu0 0.0
    %84 = vmatpush1.msra.mxu0 0.0
    %85 = vmatprep.subr.mxu0 0.0
    %86 = vmatpush1.msra.mxu0 0.0
    %87 = vmatprep.subr.mxu0 0.0
    %88 = vmatpush1.msra.mxu0 0.0
    %89 = vmatprep.subr.mxu0 0.0
    %90 = vmatpush1.msra.mxu0 0.0
    %91 = vmatprep.subr.mxu0 0.0
    %92 = vmatpush1.msra.mxu0 0.0
    %93 = vmatprep.subr.mxu0 %v65
    %94 = vmatpush1.msra.mxu0 %v62
    %95 = vmatprep.subr.mxu0 %v38
    %96 = vmatpush1.msra.mxu0 %v37
    %97 = vmatprep.subr.mxu0 %v36
    %98 = vmatpush1.msra.mxu0 %v35
    %99 = vmatprep.subr.mxu0 0.0
    %100 = vmatpush2.msra.mxu0 0.0
    %101 = vmatprep.subr.mxu0 0.0
    %102 = vmatpush2.msra.mxu0 0.0
    %103 = vmatprep.subr.mxu0 0.0
    %104 = vmatpush2.msra.mxu0 0.0
    %105 = vmatprep.subr.mxu0 0.0
    %106 = vmatpush2.msra.mxu0 0.0
    %107 = vmatprep.subr.mxu0 0.0
    %108 = vmatpush2.msra.mxu0 0.0
    %109 = vmatprep.subr.mxu0 0.0
    %110 = vmatpush2.msra.mxu0 0.0
    %111 = vmatprep.subr.mxu0 0.0
    %112 = vmatpush2.msra.mxu0 0.0
    %113 = vmatprep.subr.mxu0 0.0
    %114 = vmatpush2.msra.mxu0 0.0
    %115 = vmatprep.subr.mxu0 0.0
    %116 = vmatpush2.msra.mxu0 0.0
    %117 = vmatprep.subr.mxu0 0.0
    %118 = vmatpush2.msra.mxu0 0.0
    %119 = vmatprep.subr.mxu0 0.0
    %120 = vmatpush2.msra.mxu0 0.0
    %121 = vmatprep.subr.mxu0 0.0
    %122 = vmatpush2.msra.mxu0 0.0
    %123 = vmatprep.subr.mxu0 0.0
    %124 = vmatpush2.msra.mxu0 0.0
    %125 = vmatprep.subr.mxu0 0.0
    %126 = vmatpush2.msra.mxu0 0.0
    %127 = vmatprep.subr.mxu0 0.0
    %128 = vmatpush2.msra.mxu0 0.0
    %129 = vmatprep.subr.mxu0 0.0
    %130 = vmatpush2.msra.mxu0 0.0
    %131 = vmatprep.mubr.f32.mxu0 0.0
    %132 = vmatmul.mubr.f32.gmra.mxu0 %v55
    %v133 = vpop.f32.mrf.mxu0
    %v134 = vadd.f32 %v46, %v133
    %v135 = vpop.f32.mrf.mxu0
    %v136 = vadd.f32 %v50, %v135
    %137 = vmatprep.mubr.f32.mxu0 0.0
    %138 = vmatmul.mubr.f32.gmra.mxu0 %v58
    %v139 = vpop.f32.mrf.mxu0
    %v140 = vadd.f32 %v46, %v139
    %v141 = vpop.f32.mrf.mxu0
    %v142 = vadd.f32 %v50, %v141
    %143 = vdwg.mxu0
    %v144 = vmax.f32 %v134, 0.0
    %v145 = vmax.f32 %v136, 0.0
    %v146 = vmax.f32 %v140, 0.0
    %v147 = vmax.f32 %v142, 0.0
    %v148 = vld [vmem:[%s5] sm:$0xff]
    %v149 = vld [vmem:[%s5 + $0x8] sm:$0xff]
    %v150 = vld [vmem:[%s5 + $0x10] sm:$0xff]
    %v151 = vld [vmem:[%s5 + $0x18] sm:$0xff]
    %v152 = vld [vmem:[%s5 + $0x20] sm:$0xff]
    %v153 = vld [vmem:[%s5 + $0x28] sm:$0xff]
    %v154 = vld [vmem:[%s5 + $0x30] sm:$0xff]
    %v155 = vld [vmem:[%s5 + $0x38] sm:$0xff]
    %v156 = vld [vmem:[%s5 + $0x40] sm:$0xff]
    %v157 = vld [vmem:[%s5 + $0x48] sm:$0xff]
    %v158 = vld [vmem:[%s5 + $0x50] sm:$0xff]
    %v159 = vld [vmem:[%s5 + $0x58] sm:$0xff]
    %v160 = vld [vmem:[%s5 + $0x60] sm:$0xff]
    %v161 = vld [vmem:[%s5 + $0x68] sm:$0xff]
    %v162 = vld [vmem:[%s5 + $0x70] sm:$0xff]
    %v163 = vld [vmem:[%s5 + $0x78] sm:$0xff]
    %v164 = vld [vmem:[%s5 + $0x80] sm:$0xff]
    %v165 = vld [vmem:[%s5 + $0x88] sm:$0xff]
    %v166 = vld [vmem:[%s5 + $0x90] sm:$0xff]
    %v167 = vld [vmem:[%s5 + $0x98] sm:$0xff]
    %v168 = vld [vmem:[%s5 + $0xa0] sm:$0xff]
    %v169 = vld [vmem:[%s5 + $0xa8] sm:$0xff]
    %v170 = vld [vmem:[%s5 + $0xb0] sm:$0xff]
    %v171 = vld [vmem:[%s5 + $0xb8] sm:$0xff]
    %v172 = vld [vmem:[%s5 + $0xc0] sm:$0xff]
    %v173 = vld [vmem:[%s5 + $0xc8] sm:$0xff]
    %v174 = vld [vmem:[%s5 + $0xd0] sm:$0xff]
    %v175 = vld [vmem:[%s5 + $0xd8] sm:$0xff]
    %v176 = vld [vmem:[%s5 + $0xe0] sm:$0xff]
    %v177 = vld [vmem:[%s5 + $0xe8] sm:$0xff]
    %v178 = vld [vmem:[%s5 + $0xf0] sm:$0xff]
    %v179 = vld [vmem:[%s5 + $0xf8] sm:$0xff]
    %v180 = vunpack.c.l.bf16 %v148
    %v181 = vunpack.c.h.bf16 %v148
    %v182 = vunpack.c.l.bf16 %v149
    %v183 = vunpack.c.h.bf16 %v149
    %v184 = vunpack.c.l.bf16 %v150
    %v185 = vunpack.c.h.bf16 %v150
    %v186 = vunpack.c.l.bf16 %v151
    %v187 = vunpack.c.h.bf16 %v151
    %v188 = vunpack.c.l.bf16 %v152
    %v189 = vunpack.c.h.bf16 %v152
    %v190 = vunpack.c.l.bf16 %v153
    %v191 = vunpack.c.h.bf16 %v153
    %v192 = vunpack.c.l.bf16 %v154
    %v193 = vunpack.c.h.bf16 %v154
    %v194 = vunpack.c.l.bf16 %v155
    %v195 = vunpack.c.h.bf16 %v155
    %v196 = vunpack.c.l.bf16 %v156
    %v197 = vunpack.c.h.bf16 %v156
    %v198 = vunpack.c.l.bf16 %v157
    %v199 = vunpack.c.h.bf16 %v157
    %v200 = vunpack.c.l.bf16 %v158
    %v201 = vunpack.c.h.bf16 %v158
    %v202 = vunpack.c.l.bf16 %v159
    %v203 = vunpack.c.h.bf16 %v159
    %v204 = vunpack.c.l.bf16 %v160
    %v205 = vunpack.c.h.bf16 %v160
    %v206 = vunpack.c.l.bf16 %v161
    %v207 = vunpack.c.h.bf16 %v161
    %v208 = vunpack.c.l.bf16 %v162
    %v209 = vunpack.c.h.bf16 %v162
    %v210 = vunpack.c.l.bf16 %v163
    %v211 = vunpack.c.h.bf16 %v163
    %v212 = vunpack.c.l.bf16 %v164
    %v213 = vunpack.c.h.bf16 %v164
    %v214 = vunpack.c.l.bf16 %v165
    %v215 = vunpack.c.h.bf16 %v165
    %v216 = vunpack.c.l.bf16 %v166
    %v217 = vunpack.c.h.bf16 %v166
    %v218 = vunpack.c.l.bf16 %v167
    %v219 = vunpack.c.h.bf16 %v167
    %v220 = vunpack.c.l.bf16 %v168
    %v221 = vunpack.c.h.bf16 %v168
    %v222 = vunpack.c.l.bf16 %v169
    %v223 = vunpack.c.h.bf16 %v169
    %v224 = vunpack.c.l.bf16 %v170
    %v225 = vunpack.c.h.bf16 %v170
    %v226 = vunpack.c.l.bf16 %v171
    %v227 = vunpack.c.h.bf16 %v171
    %v228 = vunpack.c.l.bf16 %v172
    %v229 = vunpack.c.h.bf16 %v172
    %v230 = vunpack.c.l.bf16 %v173
    %v231 = vunpack.c.h.bf16 %v173
    %v232 = vunpack.c.l.bf16 %v174
    %v233 = vunpack.c.h.bf16 %v174
    %v234 = vunpack.c.l.bf16 %v175
    %v235 = vunpack.c.h.bf16 %v175
    %v236 = vunpack.c.l.bf16 %v176
    %v237 = vunpack.c.h.bf16 %v176
    %v238 = vunpack.c.l.bf16 %v177
    %v239 = vunpack.c.h.bf16 %v177
    %v240 = vunpack.c.l.bf16 %v178
    %v241 = vunpack.c.h.bf16 %v178
    %v242 = vunpack.c.l.bf16 %v179
    %v243 = vunpack.c.h.bf16 %v179
    %v244 = vld [vmem:[%s6] sm:$0x3]
    %v246 = vlaneseq
    %v247 = vshrl.u32 %v246, 7
    %v248 = vsub.s32 0, %v247
    %v249 = vrot.slane %v244, %v248
    %v250 = vlaneseq
    %v251 = vshrl.u32 %v250, 7
    %v252 = vsub.s32 1, %v251
    %v253 = vrot.slane %v244, %v252
    %256 = vmatprep.subr.mxu0 %v211
    %257 = vmatpush1.msra.mxu0 %v210
    %258 = vmatprep.subr.mxu0 %v209
    %259 = vmatpush1.msra.mxu0 %v208
    %260 = vmatprep.subr.mxu0 %v207
    %261 = vmatpush1.msra.mxu0 %v206
    %262 = vmatprep.subr.mxu0 %v205
    %263 = vmatpush1.msra.mxu0 %v204
    %264 = vmatprep.subr.mxu0 %v203
    %265 = vmatpush1.msra.mxu0 %v202
    %266 = vmatprep.subr.mxu0 %v201
    %267 = vmatpush1.msra.mxu0 %v200
    %268 = vmatprep.subr.mxu0 %v199
    %269 = vmatpush1.msra.mxu0 %v198
    %270 = vmatprep.subr.mxu0 %v197
    %271 = vmatpush1.msra.mxu0 %v196
    %272 = vmatprep.subr.mxu0 %v195
    %273 = vmatpush1.msra.mxu0 %v194
    %274 = vmatprep.subr.mxu0 %v193
    %275 = vmatpush1.msra.mxu0 %v192
    %276 = vmatprep.subr.mxu0 %v191
    %277 = vmatpush1.msra.mxu0 %v190
    %278 = vmatprep.subr.mxu0 %v189
    %279 = vmatpush1.msra.mxu0 %v188
    %280 = vmatprep.subr.mxu0 %v187
    %281 = vmatpush1.msra.mxu0 %v186
    %282 = vmatprep.subr.mxu0 %v185
    %283 = vmatpush1.msra.mxu0 %v184
    %284 = vmatprep.subr.mxu0 %v183
    %285 = vmatpush1.msra.mxu0 %v182
    %286 = vmatprep.subr.mxu0 %v181
    %287 = vmatpush1.msra.mxu0 %v180
    %288 = vmatprep.subr.mxu0 %v243
    %289 = vmatpush2.msra.mxu0 %v242
    %290 = vmatprep.subr.mxu0 %v241
    %291 = vmatpush2.msra.mxu0 %v240
    %292 = vmatprep.subr.mxu0 %v239
    %293 = vmatpush2.msra.mxu0 %v238
    %294 = vmatprep.subr.mxu0 %v237
    %295 = vmatpush2.msra.mxu0 %v236
    %296 = vmatprep.subr.mxu0 %v235
    %297 = vmatpush2.msra.mxu0 %v234
    %298 = vmatprep.subr.mxu0 %v233
    %299 = vmatpush2.msra.mxu0 %v232
    %300 = vmatprep.subr.mxu0 %v231
    %301 = vmatpush2.msra.mxu0 %v230
    %302 = vmatprep.subr.mxu0 %v229
    %303 = vmatpush2.msra.mxu0 %v228
    %304 = vmatprep.subr.mxu0 %v227
    %305 = vmatpush2.msra.mxu0 %v226
    %306 = vmatprep.subr.mxu0 %v225
    %307 = vmatpush2.msra.mxu0 %v224
    %308 = vmatprep.subr.mxu0 %v223
    %309 = vmatpush2.msra.mxu0 %v222
    %310 = vmatprep.subr.mxu0 %v221
    %311 = vmatpush2.msra.mxu0 %v220
    %312 = vmatprep.subr.mxu0 %v219
    %313 = vmatpush2.msra.mxu0 %v218
    %314 = vmatprep.subr.mxu0 %v217
    %315 = vmatpush2.msra.mxu0 %v216
    %316 = vmatprep.subr.mxu0 %v215
    %317 = vmatpush2.msra.mxu0 %v214
    %318 = vmatprep.subr.mxu0 %v213
    %319 = vmatpush2.msra.mxu0 %v212
    %320 = vmatprep.mubr.f32.mxu0 %v145
    %321 = vmatmul.mubr.f32.gmra.mxu0 %v144
    %v322 = vpop.f32.mrf.mxu0
    %v323 = vadd.f32 %v249, %v322
    %v324 = vpop.f32.mrf.mxu0
    %v325 = vadd.f32 %v253, %v324
    %326 = vmatprep.mubr.f32.mxu0 %v147
    %327 = vmatmul.mubr.f32.gmra.mxu0 %v146
    %v328 = vpop.f32.mrf.mxu0
    %v329 = vadd.f32 %v249, %v328
    %v330 = vpop.f32.mrf.mxu0
    %v331 = vadd.f32 %v253, %v330
    %332 = vdwg.mxu0
    %v333 = vmax.f32 %v323, 0.0
    %v334 = vmax.f32 %v325, 0.0
    %v335 = vmax.f32 %v329, 0.0
    %v336 = vmax.f32 %v331, 0.0
    %v337 = vld [vmem:[%s1] sm:$0x3]
    %vm338 = vcmask 130048
    %v340 = vsel %vm338, %v337, 0
    %342 = vmatprep.subr.mxu0 0.0
    %343 = vmatpush1.msra.mxu0 0.0
    %344 = vmatprep.subr.mxu0 0.0
    %345 = vmatpush1.msra.mxu0 0.0
    %346 = vmatprep.subr.mxu0 0.0
    %347 = vmatpush1.msra.mxu0 0.0
    %348 = vmatprep.subr.mxu0 0.0
    %349 = vmatpush1.msra.mxu0 0.0
    %350 = vmatprep.subr.mxu0 0.0
    %351 = vmatpush1.msra.mxu0 0.0
    %352 = vmatprep.subr.mxu0 0.0
    %353 = vmatpush1.msra.mxu0 0.0
    %354 = vmatprep.subr.mxu0 0.0
    %355 = vmatpush1.msra.mxu0 0.0
    %356 = vmatprep.subr.mxu0 0.0
    %357 = vmatpush1.msra.mxu0 0.0
    %358 = vmatprep.subr.mxu0 0.0
    %359 = vmatpush1.msra.mxu0 0.0
    %360 = vmatprep.subr.mxu0 0.0
    %361 = vmatpush1.msra.mxu0 0.0
    %362 = vmatprep.subr.mxu0 0.0
    %363 = vmatpush1.msra.mxu0 0.0
    %364 = vmatprep.subr.mxu0 0.0
    %365 = vmatpush1.msra.mxu0 0.0
    %366 = vmatprep.subr.mxu0 0.0
    %367 = vmatpush1.msra.mxu0 0.0
    %368 = vmatprep.subr.mxu0 0.0
    %369 = vmatpush1.msra.mxu0 0.0
    %370 = vmatprep.subr.mxu0 %v336
    %371 = vmatpush1.msra.mxu0 %v335
    %372 = vmatprep.subr.mxu0 %v334
    %373 = vmatpush1.msra.mxu0 %v333
    %374 = vmatprep.subr.mxu0 0.0
    %375 = vmatpush2.msra.mxu0 0.0
    %376 = vmatprep.subr.mxu0 0.0
    %377 = vmatpush2.msra.mxu0 0.0
    %378 = vmatprep.subr.mxu0 0.0
    %379 = vmatpush2.msra.mxu0 0.0
    %380 = vmatprep.subr.mxu0 0.0
    %381 = vmatpush2.msra.mxu0 0.0
    %382 = vmatprep.subr.mxu0 0.0
    %383 = vmatpush2.msra.mxu0 0.0
    %384 = vmatprep.subr.mxu0 0.0
    %385 = vmatpush2.msra.mxu0 0.0
    %386 = vmatprep.subr.mxu0 0.0
    %387 = vmatpush2.msra.mxu0 0.0
    %388 = vmatprep.subr.mxu0 0.0
    %389 = vmatpush2.msra.mxu0 0.0
    %390 = vmatprep.subr.mxu0 0.0
    %391 = vmatpush2.msra.mxu0 0.0
    %392 = vmatprep.subr.mxu0 0.0
    %393 = vmatpush2.msra.mxu0 0.0
    %394 = vmatprep.subr.mxu0 0.0
    %395 = vmatpush2.msra.mxu0 0.0
    %396 = vmatprep.subr.mxu0 0.0
    %397 = vmatpush2.msra.mxu0 0.0
    %398 = vmatprep.subr.mxu0 0.0
    %399 = vmatpush2.msra.mxu0 0.0
    %400 = vmatprep.subr.mxu0 0.0
    %401 = vmatpush2.msra.mxu0 0.0
    %402 = vmatprep.subr.mxu0 0.0
    %403 = vmatpush2.msra.mxu0 0.0
    %404 = vmatprep.subr.mxu0 0.0
    %405 = vmatpush2.msra.mxu0 0.0
    %406 = vmatprep.mubr.f32.mxu0 0.0
    %407 = vmatmul.mubr.f32.gmra.mxu0 %v340
    %v408 = vpop.f32.mrf.mxu0
    %v409 = vadd.f32 0.0, %v408
    %v410 = vpop.f32.mrf.mxu0
    %v411 = vadd.f32 0.0, %v410
    %412 = vdwg.mxu0
    %v413 = vld [vmem:[%s2] sm:$0xff]
    %v414 = vld [vmem:[%s2 + $0x8] sm:$0xff]
    %416 = vset.pattern.permute.xlu0 0
    %417 = vperm.xlu0 %416, %v413
    %v418 = vpop.permute.xlu0 %417
    %421 = vset.pattern.permute.xlu0 0
    %422 = vperm.xlu0 %421, %v414
    %v423 = vpop.permute.xlu0 %422
    %v425 = vadd.f32 %v333, %v418
    %v426 = vadd.f32 %v334, %v418
    %v427 = vadd.f32 %v335, %v423
    %v428 = vadd.f32 %v336, %v423
    %v429 = vmax.f32 %v425, %v427
    %v430 = vrot.slane %v429, 4
    %v431 = vmax.f32 %v429, %v430
    %v432 = vrot.slane %v431, 2
    %v433 = vmax.f32 %v431, %v432
    %v434 = vrot.slane %v433, 1
    %v435 = vmax.f32 %v433, %v434
    %v436 = vmax.f32 %v426, %v428
    %v437 = vrot.slane %v436, 4
    %v438 = vmax.f32 %v436, %v437
    %v439 = vrot.slane %v438, 2
    %v440 = vmax.f32 %v438, %v439
    %v441 = vrot.slane %v440, 1
    %v442 = vmax.f32 %v440, %v441
    %443 = vset.pattern.permute.xlu0 1
    %444 = vperm.xlu0 %443, %v413
    %v445 = vpop.permute.xlu0 %444
    %447 = vset.pattern.permute.xlu0 1
    %448 = vperm.xlu0 %447, %v414
    %v449 = vpop.permute.xlu0 %448
    %v451 = vadd.f32 %v333, %v445
    %v452 = vadd.f32 %v334, %v445
    %v453 = vadd.f32 %v335, %v449
    %v454 = vadd.f32 %v336, %v449
    %v455 = vmax.f32 %v451, %v453
    %v456 = vrot.slane %v455, 4
    %v457 = vmax.f32 %v455, %v456
    %v458 = vrot.slane %v457, 2
    %v459 = vmax.f32 %v457, %v458
    %v460 = vrot.slane %v459, 1
    %v461 = vmax.f32 %v459, %v460
    %v462 = vmax.f32 %v452, %v454
    %v463 = vrot.slane %v462, 4
    %v464 = vmax.f32 %v462, %v463
    %v465 = vrot.slane %v464, 2
    %v466 = vmax.f32 %v464, %v465
    %v467 = vrot.slane %v466, 1
    %v468 = vmax.f32 %v466, %v467
    %vm469 = vcmask 1040384
    %v470 = vsel %vm469, %v435, %v461
    %v471 = vsel %vm469, %v442, %v468
    %v472 = vld [vmem:[%s7] sm:$0xff]
    %v473 = vld [vmem:[%s7 + $0x8] sm:$0xff]
    %v474 = vld [vmem:[%s7 + $0x10] sm:$0xff]
    %v475 = vld [vmem:[%s7 + $0x18] sm:$0xff]
    %v476 = vld [vmem:[%s7 + $0x20] sm:$0xff]
    %v477 = vld [vmem:[%s7 + $0x28] sm:$0xff]
    %v478 = vld [vmem:[%s7 + $0x30] sm:$0xff]
    %v479 = vld [vmem:[%s7 + $0x38] sm:$0xff]
    %v480 = vld [vmem:[%s7 + $0x40] sm:$0xff]
    %v481 = vld [vmem:[%s7 + $0x48] sm:$0xff]
    %v482 = vld [vmem:[%s7 + $0x50] sm:$0xff]
    %v483 = vld [vmem:[%s7 + $0x58] sm:$0xff]
    %v484 = vld [vmem:[%s7 + $0x60] sm:$0xff]
    %v485 = vld [vmem:[%s7 + $0x68] sm:$0xff]
    %v486 = vld [vmem:[%s7 + $0x70] sm:$0xff]
    %v487 = vld [vmem:[%s7 + $0x78] sm:$0xff]
    %v488 = vld [vmem:[%s7 + $0x80] sm:$0xff]
    %v489 = vld [vmem:[%s7 + $0x88] sm:$0xff]
    %v490 = vld [vmem:[%s7 + $0x90] sm:$0xff]
    %v491 = vld [vmem:[%s7 + $0x98] sm:$0xff]
    %v492 = vld [vmem:[%s7 + $0xa0] sm:$0xff]
    %v493 = vld [vmem:[%s7 + $0xa8] sm:$0xff]
    %v494 = vld [vmem:[%s7 + $0xb0] sm:$0xff]
    %v495 = vld [vmem:[%s7 + $0xb8] sm:$0xff]
    %v496 = vld [vmem:[%s7 + $0xc0] sm:$0xff]
    %v497 = vld [vmem:[%s7 + $0xc8] sm:$0xff]
    %v498 = vld [vmem:[%s7 + $0xd0] sm:$0xff]
    %v499 = vld [vmem:[%s7 + $0xd8] sm:$0xff]
    %v500 = vld [vmem:[%s7 + $0xe0] sm:$0xff]
    %v501 = vld [vmem:[%s7 + $0xe8] sm:$0xff]
    %v502 = vld [vmem:[%s7 + $0xf0] sm:$0xff]
    %v503 = vld [vmem:[%s7 + $0xf8] sm:$0xff]
    %v504 = vld [vmem:[%s7 + $0x100] sm:$0xff]
    %v505 = vld [vmem:[%s7 + $0x108] sm:$0xff]
    %v506 = vld [vmem:[%s7 + $0x110] sm:$0xff]
    %v507 = vld [vmem:[%s7 + $0x118] sm:$0xff]
    %v508 = vld [vmem:[%s7 + $0x120] sm:$0xff]
    %v509 = vld [vmem:[%s7 + $0x128] sm:$0xff]
    %v510 = vld [vmem:[%s7 + $0x130] sm:$0xff]
    %v511 = vld [vmem:[%s7 + $0x138] sm:$0xff]
    %v512 = vld [vmem:[%s7 + $0x140] sm:$0xff]
    %v513 = vld [vmem:[%s7 + $0x148] sm:$0xff]
    %v514 = vld [vmem:[%s7 + $0x150] sm:$0xff]
    %v515 = vld [vmem:[%s7 + $0x158] sm:$0xff]
    %v516 = vld [vmem:[%s7 + $0x160] sm:$0xff]
    %v517 = vld [vmem:[%s7 + $0x168] sm:$0xff]
    %v518 = vld [vmem:[%s7 + $0x170] sm:$0xff]
    %v519 = vld [vmem:[%s7 + $0x178] sm:$0xff]
    %v520 = vld [vmem:[%s7 + $0x180] sm:$0xff]
    %v521 = vld [vmem:[%s7 + $0x188] sm:$0xff]
    %v522 = vld [vmem:[%s7 + $0x190] sm:$0xff]
    %v523 = vld [vmem:[%s7 + $0x198] sm:$0xff]
    %v524 = vld [vmem:[%s7 + $0x1a0] sm:$0xff]
    %v525 = vld [vmem:[%s7 + $0x1a8] sm:$0xff]
    %v526 = vld [vmem:[%s7 + $0x1b0] sm:$0xff]
    %v527 = vld [vmem:[%s7 + $0x1b8] sm:$0xff]
    %v528 = vld [vmem:[%s7 + $0x1c0] sm:$0xff]
    %v529 = vld [vmem:[%s7 + $0x1c8] sm:$0xff]
    %v530 = vld [vmem:[%s7 + $0x1d0] sm:$0xff]
    %v531 = vld [vmem:[%s7 + $0x1d8] sm:$0xff]
    %v532 = vld [vmem:[%s7 + $0x1e0] sm:$0xff]
    %v533 = vld [vmem:[%s7 + $0x1e8] sm:$0xff]
    %v534 = vld [vmem:[%s7 + $0x1f0] sm:$0xff]
    %v535 = vld [vmem:[%s7 + $0x1f8] sm:$0xff]
    %v536 = vld [vmem:[%s8] sm:$0x1]
    %v538 = vlaneseq
    %v539 = vshrl.u32 %v538, 7
    %v540 = vsub.s32 0, %v539
    %v541 = vrot.slane %v536, %v540
    %543 = vmatprep.subr.mxu0 0.0
    %544 = vmatpush1.msra.mxu0 %v487
    %545 = vmatprep.subr.mxu0 0.0
    %546 = vmatpush1.msra.mxu0 %v486
    %547 = vmatprep.subr.mxu0 0.0
    %548 = vmatpush1.msra.mxu0 %v485
    %549 = vmatprep.subr.mxu0 0.0
    %550 = vmatpush1.msra.mxu0 %v484
    %551 = vmatprep.subr.mxu0 0.0
    %552 = vmatpush1.msra.mxu0 %v483
    %553 = vmatprep.subr.mxu0 0.0
    %554 = vmatpush1.msra.mxu0 %v482
    %555 = vmatprep.subr.mxu0 0.0
    %556 = vmatpush1.msra.mxu0 %v481
    %557 = vmatprep.subr.mxu0 0.0
    %558 = vmatpush1.msra.mxu0 %v480
    %559 = vmatprep.subr.mxu0 0.0
    %560 = vmatpush1.msra.mxu0 %v479
    %561 = vmatprep.subr.mxu0 0.0
    %562 = vmatpush1.msra.mxu0 %v478
    %563 = vmatprep.subr.mxu0 0.0
    %564 = vmatpush1.msra.mxu0 %v477
    %565 = vmatprep.subr.mxu0 0.0
    %566 = vmatpush1.msra.mxu0 %v476
    %567 = vmatprep.subr.mxu0 0.0
    %568 = vmatpush1.msra.mxu0 %v475
    %569 = vmatprep.subr.mxu0 0.0
    %570 = vmatpush1.msra.mxu0 %v474
    %571 = vmatprep.subr.mxu0 0.0
    %572 = vmatpush1.msra.mxu0 %v473
    %573 = vmatprep.subr.mxu0 0.0
    %574 = vmatpush1.msra.mxu0 %v472
    %575 = vmatprep.subr.mxu0 0.0
    %576 = vmatpush2.msra.mxu0 %v503
    %577 = vmatprep.subr.mxu0 0.0
    %578 = vmatpush2.msra.mxu0 %v502
    %579 = vmatprep.subr.mxu0 0.0
    %580 = vmatpush2.msra.mxu0 %v501
    %581 = vmatprep.subr.mxu0 0.0
    %582 = vmatpush2.msra.mxu0 %v500
    %583 = vmatprep.subr.mxu0 0.0
    %584 = vmatpush2.msra.mxu0 %v499
    %585 = vmatprep.subr.mxu0 0.0
    %586 = vmatpush2.msra.mxu0 %v498
    %587 = vmatprep.subr.mxu0 0.0
    %588 = vmatpush2.msra.mxu0 %v497
    %589 = vmatprep.subr.mxu0 0.0
    %590 = vmatpush2.msra.mxu0 %v496
    %591 = vmatprep.subr.mxu0 0.0
    %592 = vmatpush2.msra.mxu0 %v495
    %593 = vmatprep.subr.mxu0 0.0
    %594 = vmatpush2.msra.mxu0 %v494
    %595 = vmatprep.subr.mxu0 0.0
    %596 = vmatpush2.msra.mxu0 %v493
    %597 = vmatprep.subr.mxu0 0.0
    %598 = vmatpush2.msra.mxu0 %v492
    %599 = vmatprep.subr.mxu0 0.0
    %600 = vmatpush2.msra.mxu0 %v491
    %601 = vmatprep.subr.mxu0 0.0
    %602 = vmatpush2.msra.mxu0 %v490
    %603 = vmatprep.subr.mxu0 0.0
    %604 = vmatpush2.msra.mxu0 %v489
    %605 = vmatprep.subr.mxu0 0.0
    %606 = vmatpush2.msra.mxu0 %v488
    %607 = vmatprep.mubr.f32.mxu0 %v411
    %608 = vmatmul.mubr.f32.gmra.mxu0 %v409
    %v609 = vpop.f32.mrf.mxu0
    %v610 = vadd.f32 %v541, %v609
    %v611 = vpop.f32.mrf.mxu0
    %612 = vdwg.mxu0
    %613 = vmatprep.subr.mxu0 0.0
    %614 = vmatpush1.msra.mxu0 %v519
    %615 = vmatprep.subr.mxu0 0.0
    %616 = vmatpush1.msra.mxu0 %v518
    %617 = vmatprep.subr.mxu0 0.0
    %618 = vmatpush1.msra.mxu0 %v517
    %619 = vmatprep.subr.mxu0 0.0
    %620 = vmatpush1.msra.mxu0 %v516
    %621 = vmatprep.subr.mxu0 0.0
    %622 = vmatpush1.msra.mxu0 %v515
    %623 = vmatprep.subr.mxu0 0.0
    %624 = vmatpush1.msra.mxu0 %v514
    %625 = vmatprep.subr.mxu0 0.0
    %626 = vmatpush1.msra.mxu0 %v513
    %627 = vmatprep.subr.mxu0 0.0
    %628 = vmatpush1.msra.mxu0 %v512
    %629 = vmatprep.subr.mxu0 0.0
    %630 = vmatpush1.msra.mxu0 %v511
    %631 = vmatprep.subr.mxu0 0.0
    %632 = vmatpush1.msra.mxu0 %v510
    %633 = vmatprep.subr.mxu0 0.0
    %634 = vmatpush1.msra.mxu0 %v509
    %635 = vmatprep.subr.mxu0 0.0
    %636 = vmatpush1.msra.mxu0 %v508
    %637 = vmatprep.subr.mxu0 0.0
    %638 = vmatpush1.msra.mxu0 %v507
    %639 = vmatprep.subr.mxu0 0.0
    %640 = vmatpush1.msra.mxu0 %v506
    %641 = vmatprep.subr.mxu0 0.0
    %642 = vmatpush1.msra.mxu0 %v505
    %643 = vmatprep.subr.mxu0 0.0
    %644 = vmatpush1.msra.mxu0 %v504
    %645 = vmatprep.subr.mxu0 0.0
    %646 = vmatpush2.msra.mxu0 %v535
    %647 = vmatprep.subr.mxu0 0.0
    %648 = vmatpush2.msra.mxu0 %v534
    %649 = vmatprep.subr.mxu0 0.0
    %650 = vmatpush2.msra.mxu0 %v533
    %651 = vmatprep.subr.mxu0 0.0
    %652 = vmatpush2.msra.mxu0 %v532
    %653 = vmatprep.subr.mxu0 0.0
    %654 = vmatpush2.msra.mxu0 %v531
    %655 = vmatprep.subr.mxu0 0.0
    %656 = vmatpush2.msra.mxu0 %v530
    %657 = vmatprep.subr.mxu0 0.0
    %658 = vmatpush2.msra.mxu0 %v529
    %659 = vmatprep.subr.mxu0 0.0
    %660 = vmatpush2.msra.mxu0 %v528
    %661 = vmatprep.subr.mxu0 0.0
    %662 = vmatpush2.msra.mxu0 %v527
    %663 = vmatprep.subr.mxu0 0.0
    %664 = vmatpush2.msra.mxu0 %v526
    %665 = vmatprep.subr.mxu0 0.0
    %666 = vmatpush2.msra.mxu0 %v525
    %667 = vmatprep.subr.mxu0 0.0
    %668 = vmatpush2.msra.mxu0 %v524
    %669 = vmatprep.subr.mxu0 0.0
    %670 = vmatpush2.msra.mxu0 %v523
    %671 = vmatprep.subr.mxu0 0.0
    %672 = vmatpush2.msra.mxu0 %v522
    %673 = vmatprep.subr.mxu0 0.0
    %674 = vmatpush2.msra.mxu0 %v521
    %675 = vmatprep.subr.mxu0 0.0
    %676 = vmatpush2.msra.mxu0 %v520
    %677 = vmatprep.mubr.f32.mxu0 %v471
    %678 = vmatmul.mubr.f32.gmra.mxu0 %v470
    %v679 = vpop.f32.mrf.mxu0
    %v680 = vadd.f32 %v610, %v679
    %v681 = vpop.f32.mrf.mxu0
    %682 = vdwg.mxu0
    %vm683 = vcmask 41984
    %v684 = vsel %vm683, %v680, -inf
    %685 = vmax.xlane.f32.xlu0 %v684
    %v686 = vpop.xlane.xlu0 %685
    %v687 = vsub.f32 %v680, %v686
    %v688 = vmul.f32 %v687, 1.442695
    %v689 = vpow.pop %v688
    %v690 = vsel %vm683, %v689, 0.0
    %691 = vadd.xlane.f32.xlu0 %v690
    %v692 = vpop.xlane.xlu0 %691
    %v693 = vlog2.pop %v692
    %v694 = vmul.f32 %v693, 0.6931472
    %v695 = vsub.f32 %v687, %v694
    %696 = vst.msk [vmem:[#allocation2] sm:$0x3] %vm683, %v695
    // Predicated region
    $region38: #{mlpnet_forward.1} parent=1 // pred_check
      _
    $region39: #{mlpnet_forward.1} parent=1 // pred_check_branch
      %698 = sbr.rel (0) target = $region41
    $region40: #{mlpnet_forward.1} parent=1 // pred_region
      %s700 = ssub.s32 32, 32
      %701 = vsyncadd [#allocation3], %s700
      %s703 = sshll.u32 [#allocation2], 4
      %s704 = int_to_ptr.vmem [resolvable:$true] %s703
      %706 = dma.vmem_to_hbm [thread:$0]  %s704, 32, %s9, [#allocation3]
    $region41: #{mlpnet_forward.1} parent=1 // pred_fallthru
      _
    // Predicated region
    $region42: #{mlpnet_forward.1} parent=1 // pred_check
      _
    $region43: #{mlpnet_forward.1} parent=1 // pred_check_branch
      %708 = sbr.rel (0) target = $region45
    $region44: #{mlpnet_forward.1} parent=1 // pred_region
      %709 = dma.done [#allocation3], 32
    $region45: #{mlpnet_forward.1} parent=1 // pred_fallthru
      _
    %710 = vsyncpa [#allocation3], 1

</llo_original>
